<compile_context>
chip_gen: v6e
topology: v6e:2x2x1
jax: 0.10.0
libtpu: 0.0.40
codegen_flags: <defaults>
</compile_context>

<pallas_src>
import functools

import jax
import jax.numpy as jnp
from jax import lax
from jax.experimental import pallas as pl
from jax.experimental.pallas import tpu as pltpu

EPS = 1e-5


def _bn_kernel(x_ref, gb_ref, o_ref, sum_ref, sq_ref, shift_ref,
               *, eps, inv_m, hw_valid, tm, padded):
    # Grid axes: (channel_block, phase, batch_block, spatial_tile)
    phase = pl.program_id(1)
    n = pl.program_id(2)
    t = pl.program_id(3)
    first_tile = (n == 0) & (t == 0)

    # ---- Phase 0 entry: reset accumulators, pick a per-channel shift ----------
    @pl.when((phase == 0) & first_tile)
    def _init():
        # Shifted accumulation: var = E[(x-s)^2] - E[x-s]^2 is numerically stable
        # even when |mean| >> std.  Spatial index 0 is always a real (unpadded) value.
        shift_ref[...] = x_ref[0, :, 0:1].astype(jnp.float32)      # (C_BLK, 1)
        sum_ref[...] = jnp.zeros_like(sum_ref)
        sq_ref[...] = jnp.zeros_like(sq_ref)

    # ---- Phase 0: accumulate per-channel sum / sum-of-squares (f32 scratch) ---
    @pl.when(phase == 0)
    def _accumulate():
        d = x_ref[...].astype(jnp.float32) - shift_ref[...]        # (N_BLK, C_BLK, TM)
        if padded:
            lane = lax.broadcasted_iota(jnp.int32, d.shape, 2)
            d = jnp.where(t * tm + lane < hw_valid, d, 0.0)        # drop padded lanes
        s1 = jnp.sum(jnp.sum(d, axis=2, keepdims=True), axis=0)    # (C_BLK, 1)
        s2 = jnp.sum(jnp.sum(d * d, axis=2, keepdims=True), axis=0)
        sum_ref[...] += s1
        sq_ref[...] += s2

    # ---- Phase 1 entry: fold stats into per-channel scale / shift (once) ------
    @pl.when((phase == 1) & first_tile)
    def _finalize_stats():
        g = gb_ref[:, 0:1]
        b = gb_ref[:, 1:2]
        dmean = sum_ref[...] * inv_m                    # E[x - shift]
        var = sq_ref[...] * inv_m - dmean * dmean       # biased variance, f32
        scale = g * lax.rsqrt(var + eps)                # rsqrt -> EUP slot
        mean = shift_ref[...] + dmean
        sum_ref[...] = scale                            # reuse scratch: scale
        sq_ref[...] = b - mean * scale                  # reuse scratch: shift term

    # ---- Phase 1: normalize & store (one FMA per element, lane-dense store) ---
    @pl.when(phase == 1)
    def _normalize():
        x = x_ref[...].astype(jnp.float32)
        o_ref[...] = (x * sum_ref[...] + sq_ref[...]).astype(o_ref.dtype)


def _divisors(n):
    return [d for d in range(1, n + 1) if n % d == 0]


def _plan_tiles(N, C, HW_pad, itemsize):
    """Jointly pick (n_blk, c_blk, tm) so each x block is ~4 MiB, lane-dense,
    sublane-packed, and (when possible) there are >= 2 channel blocks."""
    budget = 4 * 1024 * 1024                  # bytes per block; ~4x with in+out dbl-buf
    c_pack = max(8, 32 // itemsize)           # sublane packing: 8 f32 / 16 bf16 / 32 i8

    # Channel block candidates: divisors of C that are multiples of the packing
    # factor (unmasked sublane tiles); fall back to the full channel extent.
    c_cands = [d for d in _divisors(C) if d % c_pack == 0] or [C]
    c_min = min(c_cands)

    # Spatial tile: whole (padded) row if it fits with the smallest channel block,
    # else the largest multiple-of-128 divisor that does.
    if HW_pad * c_min * itemsize <= budget:
        tm = HW_pad
    else:
        fits = [d for d in _divisors(HW_pad)
                if d % 128 == 0 and d * c_min * itemsize <= budget]
        tm = max(fits) if fits else min(d for d in _divisors(HW_pad) if d % 128 == 0)

    # Channel block: largest packed divisor that fits the budget; prefer >= 2
    # channel blocks so the "parallel" grid axis shards across v7x's 2 TensorCores.
    fitting = [c for c in c_cands if c * tm * itemsize <= budget] or [c_min]
    multi = [c for c in fitting if C // c >= 2]
    c_blk = max(multi) if multi else max(fitting)

    # Batch sub-block: fold batch rows until the budget is used, so small-HW layers
    # still move large DMA-efficient blocks per grid step.
    max_n = max(1, budget // (c_blk * tm * itemsize))
    n_blk = max(d for d in _divisors(N) if d <= max_n)

    return n_blk, c_blk, tm


def normalizer_forward(x_nchw, gamma, beta, *, eps=EPS):
    """x_nchw: (N, C, H, W). gamma, beta: (C,). Returns (N, C, H, W)."""
    N, C, H, W = x_nchw.shape
    HW = H * W
    M = N * HW
    itemsize = jnp.dtype(x_nchw.dtype).itemsize

    x3 = x_nchw.reshape(N, C, HW)               # zero-copy view, no transpose

    # Pad the spatial axis to a multiple of 128 so every tile is lane-dense
    # (unmasked stores); padded zeros are masked out of the phase-0 reduction.
    HW_pad = HW if HW % 128 == 0 else ((HW + 127) // 128) * 128
    padded = HW_pad != HW
    if padded:
        x3 = jnp.pad(x3, ((0, 0), (0, 0), (0, HW_pad - HW)))

    n_blk, c_blk, tm = _plan_tiles(N, C, HW_pad, itemsize)
    grid = (C // c_blk, 2, N // n_blk, HW_pad // tm)

    # gamma/beta merged into one (C, 2) f32 input -> single resident DMA per c-block.
    gb = jnp.stack([gamma.astype(jnp.float32), beta.astype(jnp.float32)], axis=1)

    kernel = functools.partial(_bn_kernel, eps=eps, inv_m=1.0 / M,
                               hw_valid=HW, tm=tm, padded=padded)

    out3 = pl.pallas_call(
        kernel,
        out_shape=jax.ShapeDtypeStruct((N, C, HW_pad), x_nchw.dtype),
        grid_spec=pltpu.PrefetchScalarGridSpec(
            num_scalar_prefetch=0,
            grid=grid,
            in_specs=[
                # x: (batch_block, channel_block, lane-dense spatial tile)
                pl.BlockSpec((n_blk, c_blk, tm), lambda c, p, n, t: (n, c, t)),
                # gamma|beta: resident across phase/batch/tile (index only uses c)
                pl.BlockSpec((c_blk, 2), lambda c, p, n, t: (c, 0)),
            ],
            # Pinned to block (0, c, 0) during phase 0 (never written there, and the
            # first phase-1 block is the same index), real per-tile index during
            # phase 1 -> each output block is flushed to HBM exactly once.
            out_specs=pl.BlockSpec(
                (n_blk, c_blk, tm), lambda c, p, n, t: (p * n, c, p * t)),
            scratch_shapes=[
                pltpu.VMEM((c_blk, 1), jnp.float32),   # sum(x-shift), then scale
                pltpu.VMEM((c_blk, 1), jnp.float32),   # sum((x-shift)^2), then shift
                pltpu.VMEM((c_blk, 1), jnp.float32),   # per-channel shift
            ],
        ),
        compiler_params=pltpu.CompilerParams(
            dimension_semantics=("parallel", "arbitrary", "arbitrary", "arbitrary"),
            vmem_limit_bytes=32 * 1024 * 1024),
        cost_estimate=pl.CostEstimate(
            flops=7 * N * C * HW,
            transcendentals=C,
            bytes_accessed=3 * N * C * HW * itemsize),
    )(x3, gb)

    if padded:
        out3 = out3[:, :, :HW]
    return out3.reshape(N, C, H, W)


def _reference_bn(x_nchw, gamma, beta, eps=EPS):
    mean = jnp.mean(x_nchw, axis=(0, 2, 3), keepdims=True)
    var = jnp.mean((x_nchw - mean) ** 2, axis=(0, 2, 3), keepdims=True)
    g = gamma.reshape(1, -1, 1, 1)
    b = beta.reshape(1, -1, 1, 1)
    return (x_nchw - mean) / jnp.sqrt(var + eps) * g + b


if __name__ == "__main__":
    key = jax.random.PRNGKey(0)

    # Deterministic parameter init matching nn.BatchNorm2d defaults (frozen).
    C = 4
    gamma = jnp.ones((C,), dtype=jnp.float32)
    beta = jnp.zeros((C,), dtype=jnp.float32)

    # Case 1: lane-aligned spatial extent (HW = 256).
    k1, k2 = jax.random.split(key)
    x1 = jax.random.normal(k1, (2, C, 16, 16), dtype=jnp.float32) * 3.0 + 1.5
    out1 = jax.block_until_ready(normalizer_forward(x1, gamma, beta))
    ref1 = _reference_bn(x1, gamma, beta)
    assert out1.shape == x1.shape
    assert jnp.allclose(out1, ref1, atol=1e-4, rtol=1e-4), "mismatch (aligned HW)"

    # Case 2: odd spatial extent (HW = 49) -> exercises the padded / masked path.
    x2 = jax.random.normal(k2, (2, C, 7, 7), dtype=jnp.float32) * 2.0 - 0.75
    out2 = jax.block_until_ready(normalizer_forward(x2, gamma, beta))
    ref2 = _reference_bn(x2, gamma, beta)
    assert out2.shape == x2.shape
    assert jnp.allclose(out2, ref2, atol=1e-4, rtol=1e-4), "mismatch (padded HW)"

    print("KERNEL_OK")
</pallas_src>

<mosaic_0001>
module attributes {stable_mosaic.version = 11 : i64} {
  func.func @_bn_kernel(%arg0: i32, %arg1: i32, %arg2: i32, %arg3: i32, %arg4: memref<2x4x256xf32, #tpu.memory_space<vmem>>, %arg5: memref<4x2xf32, #tpu.memory_space<vmem>>, %arg6: memref<2x4x256xf32, #tpu.memory_space<vmem>>, %arg7: memref<4x1xf32, #tpu.memory_space<vmem>>, %arg8: memref<4x1xf32, #tpu.memory_space<vmem>>, %arg9: memref<4x1xf32, #tpu.memory_space<vmem>>) attributes {dimension_semantics = [#tpu.dimension_semantics<parallel>, #tpu.dimension_semantics<arbitrary>, #tpu.dimension_semantics<arbitrary>, #tpu.dimension_semantics<arbitrary>], iteration_bounds = array<i64: 1, 2, 1, 1>, scalar_prefetch = 0 : i64, scratch_operands = 3 : i64, tpu.core_type = #tpu.core_type<tc>, window_params = [{transform_indices = @transform_0, window_bounds = array<i64: 2, 4, 256>}, {transform_indices = @transform_1, window_bounds = array<i64: 4, 2>}, {transform_indices = @transform_2, window_bounds = array<i64: 2, 4, 256>}]} {
    %c0_i32 = arith.constant 0 : i32
    %0 = arith.cmpi eq, %arg2, %c0_i32 : i32
    %c0_i32_0 = arith.constant 0 : i32
    %1 = arith.cmpi eq, %arg3, %c0_i32_0 : i32
    %2 = arith.andi %0, %1 : i1
    %c0_i32_1 = arith.constant 0 : i32
    %3 = arith.cmpi eq, %arg1, %c0_i32_1 : i32
    %4 = arith.andi %3, %2 : i1
    %5 = arith.extui %4 : i1 to i32
    %c0_i32_2 = arith.constant 0 : i32
    %6 = arith.cmpi ne, %5, %c0_i32_2 : i32
    scf.if %6 {
      %c0 = arith.constant 0 : index
      %c0_8 = arith.constant 0 : index
      %c0_9 = arith.constant 0 : index
      %17 = vector.load %arg4[%c0, %c0_8, %c0_9] : memref<2x4x256xf32, #tpu.memory_space<vmem>>, vector<1x4x1xf32>
      %18 = vector.shape_cast %17 : vector<1x4x1xf32> to vector<4x1xf32>
      %c0_10 = arith.constant 0 : index
      %c0_11 = arith.constant 0 : index
      %19 = vector.load %arg9[%c0_10, %c0_11] : memref<4x1xf32, #tpu.memory_space<vmem>>, vector<4x1xf32>
      tpu.vector_store %arg9[%c0_10, %c0_11], %18 {strides = array<i32>} : memref<4x1xf32, #tpu.memory_space<vmem>>, vector<4x1xf32>,
      %cst = arith.constant 0.000000e+00 : f32
      %20 = vector.broadcast %cst : f32 to vector<4x1xf32>
      %c0_12 = arith.constant 0 : index
      %c0_13 = arith.constant 0 : index
      %21 = vector.load %arg7[%c0_12, %c0_13] : memref<4x1xf32, #tpu.memory_space<vmem>>, vector<4x1xf32>
      tpu.vector_store %arg7[%c0_12, %c0_13], %20 {strides = array<i32>} : memref<4x1xf32, #tpu.memory_space<vmem>>, vector<4x1xf32>,
      %cst_14 = arith.constant 0.000000e+00 : f32
      %22 = vector.broadcast %cst_14 : f32 to vector<4x1xf32>
      %c0_15 = arith.constant 0 : index
      %c0_16 = arith.constant 0 : index
      %23 = vector.load %arg8[%c0_15, %c0_16] : memref<4x1xf32, #tpu.memory_space<vmem>>, vector<4x1xf32>
      tpu.vector_store %arg8[%c0_15, %c0_16], %22 {strides = array<i32>} : memref<4x1xf32, #tpu.memory_space<vmem>>, vector<4x1xf32>,
    } else {
    }
    %c0_i32_3 = arith.constant 0 : i32
    %7 = arith.cmpi eq, %arg1, %c0_i32_3 : i32
    %8 = arith.extui %7 : i1 to i32
    %c0_i32_4 = arith.constant 0 : i32
    %9 = arith.cmpi ne, %8, %c0_i32_4 : i32
    scf.if %9 {
      %c0 = arith.constant 0 : index
      %c0_8 = arith.constant 0 : index
      %c0_9 = arith.constant 0 : index
      %17 = vector.load %arg4[%c0, %c0_8, %c0_9] : memref<2x4x256xf32, #tpu.memory_space<vmem>>, vector<2x4x256xf32>
      %c0_10 = arith.constant 0 : index
      %c0_11 = arith.constant 0 : index
      %18 = vector.load %arg9[%c0_10, %c0_11] : memref<4x1xf32, #tpu.memory_space<vmem>>, vector<4x1xf32>
      %19 = vector.shape_cast %18 : vector<4x1xf32> to vector<1x4x1xf32>
      %20 = vector.broadcast %19 : vector<1x4x1xf32> to vector<2x4x256xf32>
      %21 = arith.subf %17, %20 : vector<2x4x256xf32>
      %cst = arith.constant dense<0.000000e+00> : vector<2x4xf32>
      %22 = vector.multi_reduction <add>, %21, %cst [2] : vector<2x4x256xf32> to vector<2x4xf32>
      %23 = vector.shape_cast %22 : vector<2x4xf32> to vector<2x4x1xf32>
      %cst_12 = arith.constant dense<0.000000e+00> : vector<4x1xf32>
      %24 = vector.multi_reduction <add>, %23, %cst_12 [0] : vector<2x4x1xf32> to vector<4x1xf32>
      %25 = arith.mulf %21, %21 : vector<2x4x256xf32>
      %cst_13 = arith.constant dense<0.000000e+00> : vector<2x4xf32>
      %26 = vector.multi_reduction <add>, %25, %cst_13 [2] : vector<2x4x256xf32> to vector<2x4xf32>
      %27 = vector.shape_cast %26 : vector<2x4xf32> to vector<2x4x1xf32>
      %cst_14 = arith.constant dense<0.000000e+00> : vector<4x1xf32>
      %28 = vector.multi_reduction <add>, %27, %cst_14 [0] : vector<2x4x1xf32> to vector<4x1xf32>
      %c0_15 = arith.constant 0 : index
      %c0_16 = arith.constant 0 : index
      %29 = vector.load %arg7[%c0_15, %c0_16] : memref<4x1xf32, #tpu.memory_space<vmem>>, vector<4x1xf32>
      %30 = arith.addf %29, %24 : vector<4x1xf32>
      %c0_17 = arith.constant 0 : index
      %c0_18 = arith.constant 0 : index
      %31 = vector.load %arg7[%c0_17, %c0_18] : memref<4x1xf32, #tpu.memory_space<vmem>>, vector<4x1xf32>
      tpu.vector_store %arg7[%c0_17, %c0_18], %30 {strides = array<i32>} : memref<4x1xf32, #tpu.memory_space<vmem>>, vector<4x1xf32>,
      %c0_19 = arith.constant 0 : index
      %c0_20 = arith.constant 0 : index
      %32 = vector.load %arg8[%c0_19, %c0_20] : memref<4x1xf32, #tpu.memory_space<vmem>>, vector<4x1xf32>
      %33 = arith.addf %32, %28 : vector<4x1xf32>
      %c0_21 = arith.constant 0 : index
      %c0_22 = arith.constant 0 : index
      %34 = vector.load %arg8[%c0_21, %c0_22] : memref<4x1xf32, #tpu.memory_space<vmem>>, vector<4x1xf32>
      tpu.vector_store %arg8[%c0_21, %c0_22], %33 {strides = array<i32>} : memref<4x1xf32, #tpu.memory_space<vmem>>, vector<4x1xf32>,
    } else {
    }
    %c1_i32 = arith.constant 1 : i32
    %10 = arith.cmpi eq, %arg1, %c1_i32 : i32
    %11 = arith.andi %10, %2 : i1
    %12 = arith.extui %11 : i1 to i32
    %c0_i32_5 = arith.constant 0 : i32
    %13 = arith.cmpi ne, %12, %c0_i32_5 : i32
    scf.if %13 {
      %c0 = arith.constant 0 : index
      %c0_8 = arith.constant 0 : index
      %17 = vector.load %arg5[%c0, %c0_8] : memref<4x2xf32, #tpu.memory_space<vmem>>, vector<4x1xf32>
      %c0_9 = arith.constant 0 : index
      %c1 = arith.constant 1 : index
      %18 = vector.load %arg5[%c0_9, %c1] : memref<4x2xf32, #tpu.memory_space<vmem>>, vector<4x1xf32>
      %c0_10 = arith.constant 0 : index
      %c0_11 = arith.constant 0 : index
      %19 = vector.load %arg7[%c0_10, %c0_11] : memref<4x1xf32, #tpu.memory_space<vmem>>, vector<4x1xf32>
      %cst = arith.constant 0.001953125 : f32
      %20 = vector.broadcast %cst : f32 to vector<4x1xf32>
      %21 = arith.mulf %19, %20 : vector<4x1xf32>
      %c0_12 = arith.constant 0 : index
      %c0_13 = arith.constant 0 : index
      %22 = vector.load %arg8[%c0_12, %c0_13] : memref<4x1xf32, #tpu.memory_space<vmem>>, vector<4x1xf32>
      %cst_14 = arith.constant 0.001953125 : f32
      %23 = vector.broadcast %cst_14 : f32 to vector<4x1xf32>
      %24 = arith.mulf %22, %23 : vector<4x1xf32>
      %25 = arith.mulf %21, %21 : vector<4x1xf32>
      %26 = arith.subf %24, %25 : vector<4x1xf32>
      %cst_15 = arith.constant 9.99999974E-6 : f32
      %27 = vector.broadcast %cst_15 : f32 to vector<4x1xf32>
      %28 = arith.addf %26, %27 : vector<4x1xf32>
      %29 = math.rsqrt %28 : vector<4x1xf32>
      %30 = arith.mulf %17, %29 : vector<4x1xf32>
      %c0_16 = arith.constant 0 : index
      %c0_17 = arith.constant 0 : index
      %31 = vector.load %arg9[%c0_16, %c0_17] : memref<4x1xf32, #tpu.memory_space<vmem>>, vector<4x1xf32>
      %32 = arith.addf %31, %21 : vector<4x1xf32>
      %c0_18 = arith.constant 0 : index
      %c0_19 = arith.constant 0 : index
      %33 = vector.load %arg7[%c0_18, %c0_19] : memref<4x1xf32, #tpu.memory_space<vmem>>, vector<4x1xf32>
      tpu.vector_store %arg7[%c0_18, %c0_19], %30 {strides = array<i32>} : memref<4x1xf32, #tpu.memory_space<vmem>>, vector<4x1xf32>,
      %34 = arith.mulf %32, %30 : vector<4x1xf32>
      %35 = arith.subf %18, %34 : vector<4x1xf32>
      %c0_20 = arith.constant 0 : index
      %c0_21 = arith.constant 0 : index
      %36 = vector.load %arg8[%c0_20, %c0_21] : memref<4x1xf32, #tpu.memory_space<vmem>>, vector<4x1xf32>
      tpu.vector_store %arg8[%c0_20, %c0_21], %35 {strides = array<i32>} : memref<4x1xf32, #tpu.memory_space<vmem>>, vector<4x1xf32>,
    } else {
    }
    %c1_i32_6 = arith.constant 1 : i32
    %14 = arith.cmpi eq, %arg1, %c1_i32_6 : i32
    %15 = arith.extui %14 : i1 to i32
    %c0_i32_7 = arith.constant 0 : i32
    %16 = arith.cmpi ne, %15, %c0_i32_7 : i32
    scf.if %16 {
      %c0 = arith.constant 0 : index
      %c0_8 = arith.constant 0 : index
      %c0_9 = arith.constant 0 : index
      %17 = vector.load %arg4[%c0, %c0_8, %c0_9] : memref<2x4x256xf32, #tpu.memory_space<vmem>>, vector<2x4x256xf32>
      %c0_10 = arith.constant 0 : index
      %c0_11 = arith.constant 0 : index
      %18 = vector.load %arg7[%c0_10, %c0_11] : memref<4x1xf32, #tpu.memory_space<vmem>>, vector<4x1xf32>
      %19 = vector.shape_cast %18 : vector<4x1xf32> to vector<1x4x1xf32>
      %20 = vector.broadcast %19 : vector<1x4x1xf32> to vector<2x4x256xf32>
      %21 = arith.mulf %17, %20 : vector<2x4x256xf32>
      %c0_12 = arith.constant 0 : index
      %c0_13 = arith.constant 0 : index
      %22 = vector.load %arg8[%c0_12, %c0_13] : memref<4x1xf32, #tpu.memory_space<vmem>>, vector<4x1xf32>
      %23 = vector.shape_cast %22 : vector<4x1xf32> to vector<1x4x1xf32>
      %24 = vector.broadcast %23 : vector<1x4x1xf32> to vector<2x4x256xf32>
      %25 = arith.addf %21, %24 : vector<2x4x256xf32>
      %c0_14 = arith.constant 0 : index
      %c0_15 = arith.constant 0 : index
      %c0_16 = arith.constant 0 : index
      %26 = vector.load %arg6[%c0_14, %c0_15, %c0_16] : memref<2x4x256xf32, #tpu.memory_space<vmem>>, vector<2x4x256xf32>
      tpu.vector_store %arg6[%c0_14, %c0_15, %c0_16], %25 {strides = array<i32>} : memref<2x4x256xf32, #tpu.memory_space<vmem>>, vector<2x4x256xf32>,
    } else {
    }
    return
  }
  func.func @transform_0(%arg0: i32, %arg1: i32, %arg2: i32, %arg3: i32) -> (i32, i32, i32) {
    %c0_i32 = arith.constant 0 : i32
    return %arg2, %arg0, %arg3 : i32, i32, i32
  }
  func.func @transform_1(%arg0: i32, %arg1: i32, %arg2: i32, %arg3: i32) -> (i32, i32) {
    %c0_i32 = arith.constant 0 : i32
    %c0_i32_0 = arith.constant 0 : i32
    return %arg0, %c0_i32 : i32, i32
  }
  func.func @transform_2(%arg0: i32, %arg1: i32, %arg2: i32, %arg3: i32) -> (i32, i32, i32) {
    %0 = arith.muli %arg1, %arg2 : i32
    %1 = arith.muli %arg1, %arg3 : i32
    %c0_i32 = arith.constant 0 : i32
    return %0, %arg0, %1 : i32, i32, i32
  }
}

</mosaic_0001>

<llo_original>
// kernel: tpu_custom_call.1
$region0: #{tpu_custom_call.1}
  #allocation0 [shape = 'u32[]', space=smem, size = 0x4, offset = 0x4, fixed_abs, tag = 'smem constant byte address 0x4 - core index']
  #allocation1 [shape = 'u32[144,128]{1,0:T(1,128)}', space=vmem, size = 0x12000, scoped, tag = 'internal scratch']
  #allocation2 [shape = 'f32[4,1]{1,0:T(4,128)}', space=vmem, size = 0x800, scoped, tag = 'scratch operand']
  #allocation3 [shape = 'f32[4,1]{1,0:T(4,128)}', space=vmem, size = 0x800, scoped, tag = 'scratch operand']
  #allocation4 [shape = 'f32[4,1]{1,0:T(4,128)}', space=vmem, size = 0x800, scoped, tag = 'scratch operand']
  %s0 = inlined_call_operand.hbm [shape: f32[2,4,256], index: 0, kind: input, shape index: {}]
  %s1 = inlined_call_operand.vmem [shape: f32[4,2], index: 1, kind: input, shape index: {}]
  %s2 = inlined_call_operand.hbm [shape: f32[2,4,256], index: 2, kind: output, shape index: {}]
  %s3 = sld [smem:[#allocation0]]
  $region61: #{tpu_custom_call.1} parent=0
    _
  %s5 = ssub.s32 1, %s3
  %s6 = scalar_select 0, %s5, %s3
  $region1: #{tpu_custom_call.1} parent=0
    #allocation5 [shape = 'u8[8192]{0}', space=vmem, size = 0x2000, scoped, tag = 'input window, operand 0, single buffered']
    #allocation6 [shape = 's32[2]{0}', space=sflag, size = 0x8, scoped, tag = 'scoped memory for tpu_custom_call.1']
    #allocation7 [shape = 's32[2]{0}', space=sflag, size = 0x8, scoped, tag = 'scoped memory for tpu_custom_call.1']
    #allocation8 [shape = 'u8[16384]{0}', space=vmem, size = 0x4000, scoped, tag = 'output window, operand 0']
    %7 = vsyncpa [#allocation6], 0
    %8 = vsyncpa [#allocation7], 0
    %s9 = scalar_lea.sflag [#allocation7], 1
    %10 = vsyncpa %s9, 0
    loop: start=0, step=1, limit=4
    $region2: #{tpu_custom_call.1} parent=1 // loop_pre_header
      _
    $region3: #{tpu_custom_call.1} parent=1 // loop_header
      %s12 = sphi 0, %s16
      %p13 = scmp.ge.s32.totalorder %s12, 4
      %s19 = sphi 0, %s45
      %s20 = sphi 0, %s41
      %s21 = sphi 0, %s37
      %s22 = sphi 0, %s33
      %s23 = sphi 0, %s19
      %s24 = sphi 0, %s20
      %s25 = sphi 0, %s21
      %s26 = sphi 0, %s22
      %s27 = sphi 0, %s23
      %s28 = sphi 0, %s24
      %s29 = sphi 0, %s25
      %s30 = sphi 0, %s26
      %s52 = sphi 0, %s54
      %s55 = sphi 0, %s52
      %s56 = sphi 0, %s55
      %s72 = sphi 0, %s56
      %s78 = sphi 0, %s80
      %s81 = sphi 0, %s78
      %s82 = sphi 0, %s81
      %s98 = sphi 0, %s82
      %s112 = sphi 0, %s114
      %s115 = sphi 0, %s112
      %s116 = sphi 0, %s115
      %s132 = sphi 0, %s116
    $region4: #{tpu_custom_call.1} parent=1 // loop_header_branch
      %15 = sbr.rel (%p13) target = $region8
    $region5: #{tpu_custom_call.1} parent=1 // loop_body
      %s17 = ssub.s32 %s12, 1
      %s18 = ssub.s32 %s12, 2
      %s31 = sadd.s32 1, %s22
      %p32 = scmp.ge.s32.totalorder %s31, 1
      %s33 = scalar_select %p32, 0, %s31
      %s34 = sadd.s32 1, %s21
      %s35 = scalar_select %p32, %s34, %s21
      %p36 = scmp.ge.s32.totalorder %s35, 1
      %s37 = scalar_select %p36, 0, %s35
      %s38 = sadd.s32 1, %s20
      %s39 = scalar_select %p36, %s38, %s20
      %p40 = scmp.ge.s32.totalorder %s39, 2
      %s41 = scalar_select %p40, 0, %s39
      %s42 = sadd.s32 1, %s19
      %s43 = scalar_select %p40, %s42, %s19
      %p44 = scmp.ge.s32.totalorder %s43, 1
      %s45 = scalar_select %p44, 0, %s43
      %s46 = ssub.s32 %s21, %s37
      %s47 = ssub.s32 %s19, %s45
      %s48 = sor.u32 %s46, %s47
      %s49 = ssub.s32 %s22, %s33
      %s50 = sor.u32 %s48, %s49
      %p51 = scmp.eq.s32.totalorder %s50, 0
      %s53 = sadd.s32 %s52, 1
      %s54 = scalar_select %p51, %s52, %s53
      %p57 = pneg %p51
      %p58 = scmp.eq.s32.totalorder %s12, 1
      %p59 = por %p57, %p58
      %p60 = scmp.ne.s32.totalorder %s52, %s55
      %p61 = scmp.eq.s32.totalorder %s12, 0
      %p62 = por %p60, %p61
      %p63 = scmp.ne.s32.totalorder %s52, %s55
      %p64 = scmp.eq.s32.totalorder %s17, 1
      %p65 = por %p63, %p64
      %p66 = scmp.ne.s32.totalorder %s55, %s56
      %p67 = scmp.eq.s32.totalorder %s17, 0
      %p68 = por %p66, %p67
      %p69 = scmp.ne.s32.totalorder %s55, %s56
      %p70 = scmp.eq.s32.totalorder %s18, 1
      %p71 = por %p69, %p70
      %p73 = scmp.ne.s32.totalorder %s56, %s72
      %p74 = scmp.eq.s32.totalorder %s18, 0
      %p75 = por %p73, %p74
      %s76 = ssub.s32 %s19, %s45
      %p77 = scmp.eq.s32.totalorder %s76, 0
      %s79 = sadd.s32 %s78, 1
      %s80 = scalar_select %p77, %s78, %s79
      %p83 = pneg %p77
      %p84 = scmp.eq.s32.totalorder %s12, 1
      %p85 = por %p83, %p84
      %p86 = scmp.ne.s32.totalorder %s78, %s81
      %p87 = scmp.eq.s32.totalorder %s12, 0
      %p88 = por %p86, %p87
      %p89 = scmp.ne.s32.totalorder %s78, %s81
      %p90 = scmp.eq.s32.totalorder %s17, 1
      %p91 = por %p89, %p90
      %p92 = scmp.ne.s32.totalorder %s81, %s82
      %p93 = scmp.eq.s32.totalorder %s17, 0
      %p94 = por %p92, %p93
      %p95 = scmp.ne.s32.totalorder %s81, %s82
      %p96 = scmp.eq.s32.totalorder %s18, 1
      %p97 = por %p95, %p96
      %p99 = scmp.ne.s32.totalorder %s82, %s98
      %p100 = scmp.eq.s32.totalorder %s18, 0
      %p101 = por %p99, %p100
      %s102 = smul.u32 %s20, %s21
      %s103 = smul.u32 %s20, %s22
      %s104 = smul.u32 %s41, %s37
      %s105 = smul.u32 %s41, %s33
      %s106 = ssub.s32 %s102, %s104
      %s107 = ssub.s32 %s19, %s45
      %s108 = sor.u32 %s106, %s107
      %s109 = ssub.s32 %s103, %s105
      %s110 = sor.u32 %s108, %s109
      %p111 = scmp.eq.s32.totalorder %s110, 0
      %s113 = sadd.s32 %s112, 1
      %s114 = scalar_select %p111, %s112, %s113
      %p117 = pneg %p111
      %p118 = scmp.eq.s32.totalorder %s12, 1
      %p119 = por %p117, %p118
      %p120 = scmp.ne.s32.totalorder %s112, %s115
      %p121 = scmp.eq.s32.totalorder %s12, 0
      %p122 = por %p120, %p121
      %p123 = scmp.ne.s32.totalorder %s112, %s115
      %p124 = scmp.eq.s32.totalorder %s17, 1
      %p125 = por %p123, %p124
      %p126 = scmp.ne.s32.totalorder %s115, %s116
      %p127 = scmp.eq.s32.totalorder %s17, 0
      %p128 = por %p126, %p127
      %p129 = scmp.ne.s32.totalorder %s115, %s116
      %p130 = scmp.eq.s32.totalorder %s18, 1
      %p131 = por %p129, %p130
      %p133 = scmp.ne.s32.totalorder %s116, %s132
      %p134 = scmp.eq.s32.totalorder %s18, 0
      %p135 = por %p133, %p134
      %p136 = scmp.le.s32.totalorder 1, %s12
      %p137 = scmp.lt.s32.totalorder %s12, 3
      %p138 = pnand %p136, %p137
      %p139 = pneg %p138
      // Predicated region
      $region9: #{tpu_custom_call.1} parent=5 // pred_check
        _
      $region10: #{tpu_custom_call.1} parent=5 // pred_check_branch
        %141 = sbr.rel (%p138) target = $region12
      $region11: #{tpu_custom_call.1} parent=5 // pred_region
        %s142 = ssub.s32 %s12, 1
        // Predicated region
        $region13: #{tpu_custom_call.1} parent=11 // pred_check
          %p143 = pneg %p68
        $region14: #{tpu_custom_call.1} parent=11 // pred_check_branch
          %145 = sbr.rel (%p143) target = $region16
        $region15: #{tpu_custom_call.1} parent=11 // pred_region
          %s146 = smul.u32 2, %s25
          %s147 = smul.u32 2, %s26
          %s149 = ssub.s32 256, 256
          %150 = vsyncadd [#allocation6], %s149
          %s151 = smul.addr %s23, 2
          %s152 = sadd.s32 %s147, %s151
          %s153 = smul.addr %s146, 2
          %s154 = sadd.s32 %s152, %s153
          %s155 = smul.addr %s154, 64
          %s156 = scalar_lea.hbm %s0, %s155
          %s157 = sshll.u32 [#allocation5], 4
          %s158 = int_to_ptr.vmem [resolvable:$true] %s157
          %163 = dma.hbm_to_vmem [thread:$0]  %s156, 256, %s158, [#allocation6], 128, 128, 8
        $region16: #{tpu_custom_call.1} parent=11 // pred_fallthru
          _
        // Predicated region
        $region17: #{tpu_custom_call.1} parent=11 // pred_check
          %p164 = pneg %p94
        $region18: #{tpu_custom_call.1} parent=11 // pred_check_branch
          %166 = sbr.rel (%p164) target = $region20
        $region19: #{tpu_custom_call.1} parent=11 // pred_region
          %p167 = scmp.lt.s32.totalorder %s23, 0
          %s168 = scalar_select %p167, %s23, 0
          %s169 = smul.addr %s168, 4
          %s170 = scalar_lea.vmem %s1, %s169
        $region20: #{tpu_custom_call.1} parent=11 // pred_fallthru
          _
      $region12: #{tpu_custom_call.1} parent=5 // pred_fallthru
        _
      %p171 = scmp.lt.s32.totalorder %s12, 2
      // Predicated region
      $region21: #{tpu_custom_call.1} parent=5 // pred_check
        %p172 = pneg %p171
      $region22: #{tpu_custom_call.1} parent=5 // pred_check_branch
        %174 = sbr.rel (%p172) target = $region24
      $region23: #{tpu_custom_call.1} parent=5 // pred_region
        _
      $region24: #{tpu_custom_call.1} parent=5 // pred_fallthru
        _
      %p175 = scmp.le.s32.totalorder 1, %s12
      %p176 = scmp.lt.s32.totalorder %s12, 3
      %p177 = pnand %p175, %p176
      %p178 = pneg %p177
      // Predicated region
      $region25: #{tpu_custom_call.1} parent=5 // pred_check
        _
      $region26: #{tpu_custom_call.1} parent=5 // pred_check_branch
        %180 = sbr.rel (%p177) target = $region28
      $region27: #{tpu_custom_call.1} parent=5 // pred_region
        %s181 = ssub.s32 %s12, 1
        // Predicated region
        $region29: #{tpu_custom_call.1} parent=27 // pred_check
          %p182 = pneg %p68
        $region30: #{tpu_custom_call.1} parent=27 // pred_check_branch
          %184 = sbr.rel (%p182) target = $region32
        $region31: #{tpu_custom_call.1} parent=27 // pred_region
          %185 = dma.done [#allocation6], 256
        $region32: #{tpu_custom_call.1} parent=27 // pred_fallthru
          _
        %p186 = pneg %p68
        %p187 = pneg %p65
        %p188 = scmp.lt.s32.totalorder %s23, 0
        %s189 = scalar_select %p188, %s23, 0
        %s190 = smul.addr %s189, 4
        %s191 = scalar_lea.vmem %s1, %s190
        %p192 = pneg %p94
        %p193 = pneg %p91
        %p194 = pneg %p128
        %p195 = pneg %p125
        %s196 = sand.u32 %s115, 1
        %s197 = scalar_lea.sflag [#allocation7], %s196
        %s198 = sand.u32 %s115, 1
        %s199 = smul.addr %s198, 16
        %s200 = scalar_lea.vmem [#allocation8], %s199
        %s201 = smul.u32 2, %s25
        %s202 = smul.u32 2, %s26
        %p203 = scmp.lt.s32.totalorder %s23, 0
        %s204 = scalar_select %p203, %s23, 0
        %s205 = smul.addr %s204, 4
        %s206 = scalar_lea.vmem %s1, %s205
        %s207 = smul.u32 %s24, %s25
        %s208 = smul.u32 %s24, %s26
        %s209 = smul.u32 2, %s207
        %s210 = smul.u32 2, %s208
        %p211 = scmp.eq.s32.totalorder %s25, 0
        %p212 = scmp.eq.s32.totalorder %s26, 0
        %p213 = pnand %p211, %p212
        %p214 = pneg %p213
        %p215 = scmp.eq.s32.totalorder %s24, 0
        %p216 = pnand %p215, %p214
        %p217 = pneg %p216
        // Predicated region
        $region33: #{tpu_custom_call.1} parent=27 // pred_check
          _
        $region34: #{tpu_custom_call.1} parent=27 // pred_check_branch
          %219 = sbr.rel (%p216) target = $region36
        $region35: #{tpu_custom_call.1} parent=27 // pred_region
          %v220 = vld [vmem:[#allocation5] sm:$0xf]
          %vm221 = vcmask 3072
          %222 = vst.msk [vmem:[#allocation4] sm:$0xf] %vm221, %v220
          %223 = vst.msk [vmem:[#allocation2] sm:$0xf] %vm221, 0.0
          %224 = vst.msk [vmem:[#allocation3] sm:$0xf] %vm221, 0.0
        $region36: #{tpu_custom_call.1} parent=27 // pred_fallthru
          _
        // Predicated region
        $region37: #{tpu_custom_call.1} parent=27 // pred_check
          %p225 = pneg %p215
        $region38: #{tpu_custom_call.1} parent=27 // pred_check_branch
          %227 = sbr.rel (%p225) target = $region40
        $region39: #{tpu_custom_call.1} parent=27 // pred_region
          %v228 = vld [vmem:[#allocation5] sm:$0xff]
          %v229 = vld [vmem:[#allocation5 + $0x8] sm:$0xff]
          %v230 = vld [vmem:[#allocation4] sm:$0xf]
          %232 = vset.pattern.permute.xlu0 0
          %233 = vperm.xlu0 %232, %v230
          %v234 = vpop.permute.xlu0 %233
          %v236 = vunpack.c.l.s4 839922192
          %v237 = vunpack.c.0.s8 %v236
          %v238 = vlaneseq
          %v239 = vshrl.u32 %v238, 7
          %v240 = vsub.s32 %v237, %v239
          %v241 = vrot.slane %v234, %v240
          %v243 = vsub.f32 %v228, %v241
          %v244 = vsub.f32 %v229, %v241
          %v247 = vcombine.high %v243, %v243
          %v248 = vcombine.high %v244, %v244
          %vm251 = vcmask 1043456
          %v252 = vsel %vm251, %v243, 0.0
          %v253 = vsel %vm251, %v247, 0.0
          %v254 = vadd.f32 %v252, %v253
          %255 = vadd.xlane.f32.xlu0 %v254
          %v256 = vpop.xlane.xlu0 %255
          %v257 = vsel %vm251, %v244, 0.0
          %v258 = vsel %vm251, %v248, 0.0
          %v259 = vadd.f32 %v257, %v258
          %260 = vadd.xlane.f32.xlu0 %v259
          %v261 = vpop.xlane.xlu0 %260
          %v262 = vsel %vm251, %v256, 0.0
          %v263 = vsel %vm251, %v261, 0.0
          %v264 = vadd.f32 %v262, %v263
          %v265 = vmul.f32 %v243, %v243
          %v266 = vmul.f32 %v244, %v244
          %v269 = vcombine.high %v265, %v265
          %v270 = vcombine.high %v266, %v266
          %v273 = vsel %vm251, %v265, 0.0
          %v274 = vsel %vm251, %v269, 0.0
          %v275 = vadd.f32 %v273, %v274
          %276 = vadd.xlane.f32.xlu0 %v275
          %v277 = vpop.xlane.xlu0 %276
          %v278 = vsel %vm251, %v266, 0.0
          %v279 = vsel %vm251, %v270, 0.0
          %v280 = vadd.f32 %v278, %v279
          %281 = vadd.xlane.f32.xlu0 %v280
          %v282 = vpop.xlane.xlu0 %281
          %v283 = vsel %vm251, %v277, 0.0
          %v284 = vsel %vm251, %v282, 0.0
          %v285 = vadd.f32 %v283, %v284
          %v286 = vld [vmem:[#allocation2] sm:$0xf]
          %v287 = vadd.f32 %v286, %v264
          %vm288 = vcmask 3072
          %289 = vst.msk [vmem:[#allocation2] sm:$0xf] %vm288, %v287
          %v290 = vld [vmem:[#allocation3] sm:$0xf]
          %v291 = vadd.f32 %v290, %v285
          %292 = vst.msk [vmem:[#allocation3] sm:$0xf] %vm288, %v291
        $region40: #{tpu_custom_call.1} parent=27 // pred_fallthru
          _
        %p293 = scmp.eq.s32.totalorder %s24, 1
        %p294 = pnand %p293, %p214
        %p295 = pneg %p294
        // Predicated region
        $region41: #{tpu_custom_call.1} parent=27 // pred_check
          _
        $region42: #{tpu_custom_call.1} parent=27 // pred_check_branch
          %297 = sbr.rel (%p294) target = $region44
        $region43: #{tpu_custom_call.1} parent=27 // pred_region
          %v298 = vld [vmem:[%s206] sm:$0xf]
          %v299 = vld [vmem:[#allocation2] sm:$0xf]
          %v300 = vmul.f32 %v299, 0.001953125
          %v301 = vld [vmem:[#allocation3] sm:$0xf]
          %v302 = vmul.f32 %v301, 0.001953125
          %v303 = vmul.f32 %v300, %v300
          %v304 = vsub.f32 %v302, %v303
          %v305 = vadd.f32 %v304, 1e-05
          %v306 = vrsqrt.pop %v305
          %v307 = vmul.f32 %v298, %v306
          %v308 = vld [vmem:[#allocation4] sm:$0xf]
          %v309 = vadd.f32 %v308, %v300
          %vm310 = vcmask 3072
          %311 = vst.msk [vmem:[#allocation2] sm:$0xf] %vm310, %v307
          %v312 = vmul.f32 %v309, %v307
          %314 = vrot.lane.b32.xlu0 %v312, 1
          %v315 = vpop.permute.xlu0 %314
          %v317 = vsub.f32 %v298, %v315
          %319 = vrot.lane.b32.xlu0 %v317, 127
          %v320 = vpop.permute.xlu0 %319
          %322 = vst.msk [vmem:[#allocation3] sm:$0xf] %vm310, %v320
        $region44: #{tpu_custom_call.1} parent=27 // pred_fallthru
          _
        // Predicated region
        $region45: #{tpu_custom_call.1} parent=27 // pred_check
          %p323 = pneg %p293
        $region46: #{tpu_custom_call.1} parent=27 // pred_check_branch
          %325 = sbr.rel (%p323) target = $region48
        $region47: #{tpu_custom_call.1} parent=27 // pred_region
          %v326 = vld [vmem:[#allocation5] sm:$0xff]
          %v327 = vld [vmem:[#allocation5 + $0x8] sm:$0xff]
          %v328 = vld [vmem:[#allocation2] sm:$0xf]
          %330 = vset.pattern.permute.xlu0 0
          %331 = vperm.xlu0 %330, %v328
          %v332 = vpop.permute.xlu0 %331
          %v334 = vunpack.c.l.s4 839922192
          %v335 = vunpack.c.0.s8 %v334
          %v336 = vlaneseq
          %v337 = vshrl.u32 %v336, 7
          %v338 = vsub.s32 %v335, %v337
          %v339 = vrot.slane %v332, %v338
          %v341 = vmul.f32 %v326, %v339
          %v342 = vmul.f32 %v327, %v339
          %v343 = vld [vmem:[#allocation3] sm:$0xf]
          %345 = vset.pattern.permute.xlu0 0
          %346 = vperm.xlu0 %345, %v343
          %v347 = vpop.permute.xlu0 %346
          %v349 = vunpack.c.l.s4 839922192
          %v350 = vunpack.c.0.s8 %v349
          %v351 = vlaneseq
          %v352 = vshrl.u32 %v351, 7
          %v353 = vsub.s32 %v350, %v352
          %v354 = vrot.slane %v347, %v353
          %v356 = vadd.f32 %v341, %v354
          %v357 = vadd.f32 %v342, %v354
          %358 = vst [vmem:[%s200] sm:$0xff] %v356
          %359 = vst [vmem:[%s200 + $0x8] sm:$0xff] %v357
        $region48: #{tpu_custom_call.1} parent=27 // pred_fallthru
          _
        %s360 = sand.u32 %s115, 1
        %s361 = scalar_lea.sflag [#allocation7], %s360
        %s362 = sand.u32 %s115, 1
        %s363 = smul.addr %s362, 16
        %s364 = scalar_lea.vmem [#allocation8], %s363
        // Predicated region
        $region49: #{tpu_custom_call.1} parent=27 // pred_check
          %p365 = pneg %p125
        $region50: #{tpu_custom_call.1} parent=27 // pred_check_branch
          %367 = sbr.rel (%p365) target = $region52
        $region51: #{tpu_custom_call.1} parent=27 // pred_region
          %s368 = smul.u32 %s24, %s25
          %s369 = smul.u32 %s24, %s26
          %s370 = smul.u32 2, %s368
          %s371 = smul.u32 2, %s369
          %s373 = ssub.s32 256, 256
          %374 = vsyncadd %s361, %s373
          %s375 = smul.addr %s23, 2
          %s376 = sadd.s32 %s371, %s375
          %s377 = smul.addr %s370, 2
          %s378 = sadd.s32 %s376, %s377
          %s379 = smul.addr %s378, 64
          %s380 = scalar_lea.hbm %s2, %s379
          %s381 = sshll.u32 %s364, 4
          %s382 = int_to_ptr.vmem [resolvable:$true] %s381
          %387 = dma.vmem_to_hbm [thread:$0]  %s382, 256, %s380, %s361, 128, 128, 8
        $region52: #{tpu_custom_call.1} parent=27 // pred_fallthru
          _
      $region28: #{tpu_custom_call.1} parent=5 // pred_fallthru
        _
      %p388 = scmp.le.s32.totalorder 2, %s12
      // Predicated region
      $region53: #{tpu_custom_call.1} parent=5 // pred_check
        %p389 = pneg %p388
      $region54: #{tpu_custom_call.1} parent=5 // pred_check_branch
        %391 = sbr.rel (%p389) target = $region56
      $region55: #{tpu_custom_call.1} parent=5 // pred_region
        %s392 = ssub.s32 %s12, 2
        // Predicated region
        $region57: #{tpu_custom_call.1} parent=55 // pred_check
          %p393 = pneg %p131
        $region58: #{tpu_custom_call.1} parent=55 // pred_check_branch
          %395 = sbr.rel (%p393) target = $region60
        $region59: #{tpu_custom_call.1} parent=55 // pred_region
          %s396 = sand.u32 %s116, 1
          %s397 = scalar_lea.sflag [#allocation7], %s396
          %s398 = sand.u32 %s116, 1
          %s399 = smul.addr %s398, 16
          %s400 = scalar_lea.vmem [#allocation8], %s399
          %401 = dma.done %s397, 256
        $region60: #{tpu_custom_call.1} parent=55 // pred_fallthru
          _
      $region56: #{tpu_custom_call.1} parent=5 // pred_fallthru
        _
    $region6: #{tpu_custom_call.1} parent=1 // loop_footer
      %s16 = sadd.s32 1, %s12
    $region7: #{tpu_custom_call.1} parent=1 // loop_footer_branch
      %11 = sbr.rel target = $region3
    $region8: #{tpu_custom_call.1} parent=1 // loop_exit
      _
    %402 = vsyncpa [#allocation6], 1
    %s403 = scalar_lea.sflag [#allocation6], 1
    %404 = vsyncpa %s403, 1
    %405 = vsyncpa [#allocation7], 1
    %s406 = scalar_lea.sflag [#allocation7], 1
    %407 = vsyncpa %s406, 1

</llo_original>
